<compile_context>
chip_gen: v5e
topology: v5e:2x2
jax: 0.10.0
libtpu: 0.0.40
codegen_flags: <defaults>
</compile_context>

<pallas_src>
import functools

import jax
import jax.numpy as jnp
from jax import lax
from jax.experimental import pallas as pl
from jax.experimental.pallas import tpu as pltpu


# dot_general dimension numbers contracting the LAST dim of both operands
# (same pattern Pallas flash-attention uses for q @ k^T): the result's second
# dim (the batch) lands on the lane axis with no transpose materialized.
_NT_DIMS = (((1,), (1,)), ((), ()))


def _mlp_kernel(x_ref, w1T_ref, b1_ref, w2T_ref, b2_ref, w3T_ref, b3_ref, o_ref,
                *, chunk, mxu_dtype):
    """One grid step: x tile (block_n, K) -> output tile (C, block_n).

    All activations are batch-on-lanes (features x lanes), so bias adds and
    tanh run full-width on the VPU/EUP and every output store is a lane-dense
    vst.  The block is processed in `chunk`-column sub-chunks to bound vreg
    pressure and give the scheduler independent MXU/EUP chains.
    """
    # Weights / biases are tiny and grid-resident; load them once.
    w1T = w1T_ref[...].astype(mxu_dtype)           # (H1, K)
    w2T = w2T_ref[...].astype(mxu_dtype)           # (H2, H1)
    w3T = w3T_ref[...].astype(mxu_dtype)           # (C,  H2)
    b1 = b1_ref[...]                               # (H1, 1) f32
    b2 = b2_ref[...]                               # (H2, 1) f32
    b3 = b3_ref[...]                               # (C,  1) f32

    block_n = x_ref.shape[0]
    n_chunks = block_n // chunk                    # static Python int

    for c in range(n_chunks):                      # static, fully unrolled
        start = c * chunk                          # static, chunk-aligned
        xc = x_ref[pl.ds(start, chunk), :].astype(mxu_dtype)        # (chunk, K)
        # Layer 1: contract over K (last dim of both) -> (H1, chunk), f32 acc.
        g1 = lax.dot_general(w1T, xc, _NT_DIMS,
                             preferred_element_type=jnp.float32)
        h1 = jnp.tanh(g1 + b1)                                       # (H1, chunk)
        # Layer 2: (H2, H1) @ (H1, chunk) -> (H2, chunk).
        h2 = jnp.tanh(
            jnp.dot(w2T, h1.astype(mxu_dtype),
                    preferred_element_type=jnp.float32) + b2)
        # Layer 3: (C, H2) @ (H2, chunk) -> (C, chunk).
        y = jnp.dot(w3T, h2.astype(mxu_dtype),
                    preferred_element_type=jnp.float32) + b3
        o_ref[:, pl.ds(start, chunk)] = y.astype(o_ref.dtype)        # lane-dense


def _round_up(x, m):
    return (x + m - 1) // m * m


@functools.partial(
    jax.jit,
    static_argnames=("block_n_max", "chunk", "use_bf16", "transposed_output"))
def net_qc_w_forward(x, params, *, block_n_max=4096, chunk=256,
                     use_bf16=False, transposed_output=False):
    """Forward pass of Net_qc_w.

    x: (N, K) float32.  params: w1 (K,32), b1 (1,32), w2 (32,32), b2 (1,32),
    w3 (32,C), b3 (1,C).  Returns (N, C) float32 (PyTorch layout) unless
    transposed_output=True, in which case the kernel's native lane-dense
    (C, N) layout is returned and the final HBM transpose pass is skipped.
    """
    w1, b1 = params["w1"], params["b1"]
    w2, b2 = params["w2"], params["b2"]
    w3, b3 = params["w3"], params["b3"]

    N, K = x.shape
    H1 = w1.shape[1]
    H2 = w2.shape[1]
    C = w3.shape[1]
    assert chunk % 128 == 0, "chunk must be a multiple of 128 (lane width)"

    # Lane-tile selection: big enough to amortize per-grid-step overhead, but
    # keep >= 2 grid steps when N allows so both v7x TensorCores get work.
    # No jnp.pad: Pallas masks the ragged boundary block (columns are
    # independent; out-of-bounds results are simply never written back).
    block_n = min(_round_up(max((N + 1) // 2, 1), chunk),
                  _round_up(block_n_max, chunk))
    block_n = max(block_n, chunk)
    grid = (pl.cdiv(N, block_n),)

    # Batch-on-lanes weights: tiny transposes (<= 32x32), negligible.
    w1T, b1T = w1.T, b1.T                          # (H1, K), (H1, 1)
    w2T, b2T = w2.T, b2.T                          # (H2, H1), (H2, 1)
    w3T, b3T = w3.T, b3.T                          # (C, H2), (C, 1)

    # Constant block index -> Pallas skips the re-DMA; effectively VMEM-resident.
    resident = lambda shape: pl.BlockSpec(shape, lambda i: (0, 0))

    kernel = functools.partial(
        _mlp_kernel, chunk=chunk,
        mxu_dtype=jnp.bfloat16 if use_bf16 else jnp.float32)

    weight_elems = K * H1 + H1 + H1 * H2 + H2 + H2 * C + C
    cost = pl.CostEstimate(
        flops=2 * N * (K * H1 + H1 * H2 + H2 * C),
        transcendentals=N * (H1 + H2),
        bytes_accessed=4 * (N * (K + C) + weight_elems),
    )

    outT = pl.pallas_call(
        kernel,
        out_shape=jax.ShapeDtypeStruct((C, N), x.dtype),
        grid=grid,
        in_specs=[
            pl.BlockSpec((block_n, K), lambda i: (i, 0)),   # x tile: contiguous DMA
            resident((H1, K)),
            resident((H1, 1)),
            resident((H2, H1)),
            resident((H2, 1)),
            resident((C, H2)),
            resident((C, 1)),
        ],
        out_specs=pl.BlockSpec((C, block_n), lambda i: (0, i)),
        compiler_params=pltpu.CompilerParams(
            dimension_semantics=("parallel",),
        ),
        cost_estimate=cost,
    )(x, w1T, b1T, w2T, b2T, w3T, b3T)

    if transposed_output:
        return outT                                # (C, N), lane-dense
    return outT.T                                  # (N, C), PyTorch layout


def init_params(key, K, C):
    """Deterministic init mimicking PyTorch Linear's U(-1/sqrt(fan_in), ...)."""
    ks = jax.random.split(key, 6)

    def linear(kw, kb, fan_in, fan_out):
        bound = 1.0 / jnp.sqrt(jnp.float32(fan_in))
        w = jax.random.uniform(kw, (fan_in, fan_out), jnp.float32, -bound, bound)
        b = jax.random.uniform(kb, (1, fan_out), jnp.float32, -bound, bound)
        return w, b

    w1, b1 = linear(ks[0], ks[1], K, 32)
    w2, b2 = linear(ks[2], ks[3], 32, 32)
    w3, b3 = linear(ks[4], ks[5], 32, C)
    return {"w1": w1, "b1": b1, "w2": w2, "b2": b2, "w3": w3, "b3": b3}


def reference_forward(x, p):
    y = jnp.tanh(x @ p["w1"] + p["b1"])
    y = jnp.tanh(y @ p["w2"] + p["b2"])
    return y @ p["w3"] + p["b3"]


if __name__ == "__main__":
    K, C = 8, 4        # input features, output classes
    key = jax.random.PRNGKey(0)
    k_p, k_x1, k_x2 = jax.random.split(key, 3)
    params = init_params(k_p, K, C)

    # Case 1: N=512 -> block_n=256, grid=(2,): multi-step grid / dual-TC path.
    N1 = 512
    x1 = jax.random.normal(k_x1, (N1, K), jnp.float32)
    out1 = jax.block_until_ready(net_qc_w_forward(x1, params))
    ref1 = reference_forward(x1, params)
    assert out1.shape == (N1, C)
    assert jnp.allclose(out1, ref1, atol=1e-5, rtol=1e-5), "mismatch (case 1)"

    # Case 2: ragged N=100 -> single boundary block, no pad copy; Pallas masks
    # the out-of-bounds columns on output writeback.
    N2 = 100
    x2 = jax.random.normal(k_x2, (N2, K), jnp.float32)
    out2 = jax.block_until_ready(net_qc_w_forward(x2, params))
    ref2 = reference_forward(x2, params)
    assert out2.shape == (N2, C)
    assert jnp.allclose(out2, ref2, atol=1e-5, rtol=1e-5), "mismatch (case 2)"

    # Case 3: lane-dense (C, N) output path (skips the final transpose pass).
    out3 = jax.block_until_ready(
        net_qc_w_forward(x1, params, transposed_output=True))
    assert out3.shape == (C, N1)
    assert jnp.allclose(out3.T, ref1, atol=1e-5, rtol=1e-5), "mismatch (case 3)"

    print("KERNEL_OK")
</pallas_src>

<mosaic_0001>
module attributes {stable_mosaic.version = 11 : i64} {
  func.func @_mlp_kernel(%arg0: i32, %arg1: memref<256x8xf32, #tpu.memory_space<vmem>>, %arg2: memref<32x8xf32, #tpu.memory_space<vmem>>, %arg3: memref<32x1xf32, #tpu.memory_space<vmem>>, %arg4: memref<32x32xf32, #tpu.memory_space<vmem>>, %arg5: memref<32x1xf32, #tpu.memory_space<vmem>>, %arg6: memref<4x32xf32, #tpu.memory_space<vmem>>, %arg7: memref<4x1xf32, #tpu.memory_space<vmem>>, %arg8: memref<4x256xf32, #tpu.memory_space<vmem>>) attributes {dimension_semantics = [#tpu.dimension_semantics<parallel>], iteration_bounds = array<i64: 2>, scalar_prefetch = 0 : i64, scratch_operands = 0 : i64, tpu.core_type = #tpu.core_type<tc>, window_params = [{transform_indices = @transform_0, window_bounds = array<i64: 256, 8>}, {pipeline_mode = #tpu.pipeline_mode<synchronous>, transform_indices = @transform_1, window_bounds = array<i64: 32, 8>}, {pipeline_mode = #tpu.pipeline_mode<synchronous>, transform_indices = @transform_2, window_bounds = array<i64: 32, 1>}, {pipeline_mode = #tpu.pipeline_mode<synchronous>, transform_indices = @transform_3, window_bounds = array<i64: 32, 32>}, {pipeline_mode = #tpu.pipeline_mode<synchronous>, transform_indices = @transform_4, window_bounds = array<i64: 32, 1>}, {pipeline_mode = #tpu.pipeline_mode<synchronous>, transform_indices = @transform_5, window_bounds = array<i64: 4, 32>}, {pipeline_mode = #tpu.pipeline_mode<synchronous>, transform_indices = @transform_6, window_bounds = array<i64: 4, 1>}, {transform_indices = @transform_7, window_bounds = array<i64: 4, 256>}]} {
    %c0 = arith.constant 0 : index
    %c0_0 = arith.constant 0 : index
    %0 = vector.load %arg2[%c0, %c0_0] : memref<32x8xf32, #tpu.memory_space<vmem>>, vector<32x8xf32>
    %c0_1 = arith.constant 0 : index
    %c0_2 = arith.constant 0 : index
    %1 = vector.load %arg4[%c0_1, %c0_2] : memref<32x32xf32, #tpu.memory_space<vmem>>, vector<32x32xf32>
    %c0_3 = arith.constant 0 : index
    %c0_4 = arith.constant 0 : index
    %2 = vector.load %arg6[%c0_3, %c0_4] : memref<4x32xf32, #tpu.memory_space<vmem>>, vector<4x32xf32>
    %c0_5 = arith.constant 0 : index
    %c0_6 = arith.constant 0 : index
    %3 = vector.load %arg3[%c0_5, %c0_6] : memref<32x1xf32, #tpu.memory_space<vmem>>, vector<32x1xf32>
    %c0_7 = arith.constant 0 : index
    %c0_8 = arith.constant 0 : index
    %4 = vector.load %arg5[%c0_7, %c0_8] : memref<32x1xf32, #tpu.memory_space<vmem>>, vector<32x1xf32>
    %c0_9 = arith.constant 0 : index
    %c0_10 = arith.constant 0 : index
    %5 = vector.load %arg7[%c0_9, %c0_10] : memref<4x1xf32, #tpu.memory_space<vmem>>, vector<4x1xf32>
    %c0_11 = arith.constant 0 : index
    %c0_12 = arith.constant 0 : index
    %6 = vector.load %arg1[%c0_11, %c0_12] : memref<256x8xf32, #tpu.memory_space<vmem>>, vector<256x8xf32>
    %cst = arith.constant dense<0.000000e+00> : vector<32x256xf32>
    %7 = tpu.matmul %0, %6, %cst {dimension_numbers = #tpu.dot_dimension_numbers<[1], [1], [0], [0], [0, 0, 1, 0], [], []>} : vector<32x8xf32>, vector<256x8xf32>, vector<32x256xf32> -> vector<32x256xf32>
    %8 = vector.broadcast %3 : vector<32x1xf32> to vector<32x256xf32>
    %9 = arith.addf %7, %8 : vector<32x256xf32>
    %10 = math.tanh %9 : vector<32x256xf32>
    %cst_13 = arith.constant dense<0.000000e+00> : vector<32x256xf32>
    %11 = tpu.matmul %1, %10, %cst_13 {dimension_numbers = #tpu.dot_dimension_numbers<[1], [0], [0], [1], [0, 0, 1, 1], [], []>} : vector<32x32xf32>, vector<32x256xf32>, vector<32x256xf32> -> vector<32x256xf32>
    %12 = vector.broadcast %4 : vector<32x1xf32> to vector<32x256xf32>
    %13 = arith.addf %11, %12 : vector<32x256xf32>
    %14 = math.tanh %13 : vector<32x256xf32>
    %cst_14 = arith.constant dense<0.000000e+00> : vector<4x256xf32>
    %15 = tpu.matmul %2, %14, %cst_14 {dimension_numbers = #tpu.dot_dimension_numbers<[1], [0], [0], [1], [0, 0, 1, 1], [], []>} : vector<4x32xf32>, vector<32x256xf32>, vector<4x256xf32> -> vector<4x256xf32>
    %16 = vector.broadcast %5 : vector<4x1xf32> to vector<4x256xf32>
    %17 = arith.addf %15, %16 : vector<4x256xf32>
    %c0_15 = arith.constant 0 : index
    %c0_16 = arith.constant 0 : index
    %18 = vector.load %arg8[%c0_15, %c0_16] : memref<4x256xf32, #tpu.memory_space<vmem>>, vector<4x256xf32>
    tpu.vector_store %arg8[%c0_15, %c0_16], %17 {strides = array<i32>} : memref<4x256xf32, #tpu.memory_space<vmem>>, vector<4x256xf32>,
    return
  }
  func.func @transform_0(%arg0: i32) -> (i32, i32) {
    %c0_i32 = arith.constant 0 : i32
    %c0_i32_0 = arith.constant 0 : i32
    return %arg0, %c0_i32 : i32, i32
  }
  func.func @transform_1(%arg0: i32) -> (i32, i32) {
    %c0_i32 = arith.constant 0 : i32
    %c0_i32_0 = arith.constant 0 : i32
    %c0_i32_1 = arith.constant 0 : i32
    return %c0_i32, %c0_i32_0 : i32, i32
  }
  func.func @transform_2(%arg0: i32) -> (i32, i32) {
    %c0_i32 = arith.constant 0 : i32
    %c0_i32_0 = arith.constant 0 : i32
    %c0_i32_1 = arith.constant 0 : i32
    return %c0_i32, %c0_i32_0 : i32, i32
  }
  func.func @transform_3(%arg0: i32) -> (i32, i32) {
    %c0_i32 = arith.constant 0 : i32
    %c0_i32_0 = arith.constant 0 : i32
    %c0_i32_1 = arith.constant 0 : i32
    return %c0_i32, %c0_i32_0 : i32, i32
  }
  func.func @transform_4(%arg0: i32) -> (i32, i32) {
    %c0_i32 = arith.constant 0 : i32
    %c0_i32_0 = arith.constant 0 : i32
    %c0_i32_1 = arith.constant 0 : i32
    return %c0_i32, %c0_i32_0 : i32, i32
  }
  func.func @transform_5(%arg0: i32) -> (i32, i32) {
    %c0_i32 = arith.constant 0 : i32
    %c0_i32_0 = arith.constant 0 : i32
    %c0_i32_1 = arith.constant 0 : i32
    return %c0_i32, %c0_i32_0 : i32, i32
  }
  func.func @transform_6(%arg0: i32) -> (i32, i32) {
    %c0_i32 = arith.constant 0 : i32
    %c0_i32_0 = arith.constant 0 : i32
    %c0_i32_1 = arith.constant 0 : i32
    return %c0_i32, %c0_i32_0 : i32, i32
  }
  func.func @transform_7(%arg0: i32) -> (i32, i32) {
    %c0_i32 = arith.constant 0 : i32
    %c0_i32_0 = arith.constant 0 : i32
    return %c0_i32, %arg0 : i32, i32
  }
}

</mosaic_0001>

<llo_original>
// kernel: net_qc_w_forward.1
$region0: #{net_qc_w_forward.1}
  #allocation0 [shape = 'u32[]', space=smem, size = 0x4, offset = 0x4, fixed_abs, tag = 'smem constant byte address 0x4 - core index']
  #allocation1 [shape = 'u32[72,128]{1,0:T(1,128)}', space=vmem, size = 0x9000, scoped, tag = 'internal scratch']
  %s0 = inlined_call_operand.vmem [shape: f32[512,8], index: 0, kind: input, shape index: {}]
  %s1 = inlined_call_operand.vmem [shape: f32[32,8], index: 1, kind: input, shape index: {}]
  %s2 = inlined_call_operand.vmem [shape: f32[32,1], index: 2, kind: input, shape index: {}]
  %s3 = inlined_call_operand.vmem [shape: f32[32,32], index: 3, kind: input, shape index: {}]
  %s4 = inlined_call_operand.vmem [shape: f32[32,1], index: 4, kind: input, shape index: {}]
  %s5 = inlined_call_operand.vmem [shape: f32[4,32], index: 5, kind: input, shape index: {}]
  %s6 = inlined_call_operand.vmem [shape: f32[4,1], index: 6, kind: input, shape index: {}]
  %s7 = inlined_call_operand.hbm [shape: f32[4,512], index: 7, kind: output, shape index: {}]
  %s8 = sld [smem:[#allocation0]]
  $region61: #{net_qc_w_forward.1} parent=0
    _
  %s10 = ssub.s32 1, %s8
  %s11 = scalar_select 0, %s10, %s8
  $region1: #{net_qc_w_forward.1} parent=0
    #allocation2 [shape = 'u8[8192]{0}', space=vmem, size = 0x2000, scoped, tag = 'output window, operand 0']
    #allocation3 [shape = 's32[2]{0}', space=sflag, size = 0x8, scoped, tag = 'scoped memory for net_qc_w_forward.1']
    %12 = vsyncpa [#allocation3], 0
    %s13 = scalar_lea.sflag [#allocation3], 1
    %14 = vsyncpa %s13, 0
    loop: start=0, step=1, limit=4
    $region2: #{net_qc_w_forward.1} parent=1 // loop_pre_header
      _
    $region3: #{net_qc_w_forward.1} parent=1 // loop_header
      %s16 = sphi 0, %s20
      %p17 = scmp.ge.s32.totalorder %s16, 4
      %s26 = sphi 0, %s28
      %s29 = sphi 0, %s26
      %s30 = sphi 0, %s29
      %s46 = sphi 0, %s30
      %s50 = sphi 0, %s50
      %s52 = sphi 0, %s50
      %s53 = sphi 0, %s52
      %s67 = sphi 0, %s53
      %s71 = sphi 0, %s71
      %s73 = sphi 0, %s71
      %s74 = sphi 0, %s73
      %s88 = sphi 0, %s74
      %s92 = sphi 0, %s92
      %s94 = sphi 0, %s92
      %s95 = sphi 0, %s94
      %s109 = sphi 0, %s95
      %s113 = sphi 0, %s113
      %s115 = sphi 0, %s113
      %s116 = sphi 0, %s115
      %s130 = sphi 0, %s116
      %s134 = sphi 0, %s134
      %s136 = sphi 0, %s134
      %s137 = sphi 0, %s136
      %s151 = sphi 0, %s137
      %s155 = sphi 0, %s155
      %s157 = sphi 0, %s155
      %s158 = sphi 0, %s157
      %s172 = sphi 0, %s158
      %s178 = sphi 0, %s180
      %s181 = sphi 0, %s178
      %s182 = sphi 0, %s181
      %s198 = sphi 0, %s182
    $region4: #{net_qc_w_forward.1} parent=1 // loop_header_branch
      %19 = sbr.rel (%p17) target = $region8
    $region5: #{net_qc_w_forward.1} parent=1 // loop_body
      %s21 = ssub.s32 %s16, 1
      %s22 = ssub.s32 %s16, 2
      %s23 = sadd.s32 %s16, 1
      %s24 = ssub.s32 %s16, %s23
      %p25 = scmp.eq.s32.totalorder %s24, 0
      %s27 = sadd.s32 %s26, 1
      %s28 = scalar_select %p25, %s26, %s27
      %p31 = pneg %p25
      %p32 = scmp.eq.s32.totalorder %s16, 1
      %p33 = por %p31, %p32
      %p34 = scmp.ne.s32.totalorder %s26, %s29
      %p35 = scmp.eq.s32.totalorder %s16, 0
      %p36 = por %p34, %p35
      %p37 = scmp.ne.s32.totalorder %s26, %s29
      %p38 = scmp.eq.s32.totalorder %s21, 1
      %p39 = por %p37, %p38
      %p40 = scmp.ne.s32.totalorder %s29, %s30
      %p41 = scmp.eq.s32.totalorder %s21, 0
      %p42 = por %p40, %p41
      %p43 = scmp.ne.s32.totalorder %s29, %s30
      %p44 = scmp.eq.s32.totalorder %s22, 1
      %p45 = por %p43, %p44
      %p47 = scmp.ne.s32.totalorder %s30, %s46
      %p48 = scmp.eq.s32.totalorder %s22, 0
      %p49 = por %p47, %p48
      %s51 = sadd.s32 %s50, 1
      %p54 = scmp.eq.s32.totalorder %s16, 1
      %p55 = scmp.ne.s32.totalorder %s50, %s52
      %p56 = scmp.eq.s32.totalorder %s16, 0
      %p57 = por %p55, %p56
      %p58 = scmp.ne.s32.totalorder %s50, %s52
      %p59 = scmp.eq.s32.totalorder %s21, 1
      %p60 = por %p58, %p59
      %p61 = scmp.ne.s32.totalorder %s52, %s53
      %p62 = scmp.eq.s32.totalorder %s21, 0
      %p63 = por %p61, %p62
      %p64 = scmp.ne.s32.totalorder %s52, %s53
      %p65 = scmp.eq.s32.totalorder %s22, 1
      %p66 = por %p64, %p65
      %p68 = scmp.ne.s32.totalorder %s53, %s67
      %p69 = scmp.eq.s32.totalorder %s22, 0
      %p70 = por %p68, %p69
      %s72 = sadd.s32 %s71, 1
      %p75 = scmp.eq.s32.totalorder %s16, 1
      %p76 = scmp.ne.s32.totalorder %s71, %s73
      %p77 = scmp.eq.s32.totalorder %s16, 0
      %p78 = por %p76, %p77
      %p79 = scmp.ne.s32.totalorder %s71, %s73
      %p80 = scmp.eq.s32.totalorder %s21, 1
      %p81 = por %p79, %p80
      %p82 = scmp.ne.s32.totalorder %s73, %s74
      %p83 = scmp.eq.s32.totalorder %s21, 0
      %p84 = por %p82, %p83
      %p85 = scmp.ne.s32.totalorder %s73, %s74
      %p86 = scmp.eq.s32.totalorder %s22, 1
      %p87 = por %p85, %p86
      %p89 = scmp.ne.s32.totalorder %s74, %s88
      %p90 = scmp.eq.s32.totalorder %s22, 0
      %p91 = por %p89, %p90
      %s93 = sadd.s32 %s92, 1
      %p96 = scmp.eq.s32.totalorder %s16, 1
      %p97 = scmp.ne.s32.totalorder %s92, %s94
      %p98 = scmp.eq.s32.totalorder %s16, 0
      %p99 = por %p97, %p98
      %p100 = scmp.ne.s32.totalorder %s92, %s94
      %p101 = scmp.eq.s32.totalorder %s21, 1
      %p102 = por %p100, %p101
      %p103 = scmp.ne.s32.totalorder %s94, %s95
      %p104 = scmp.eq.s32.totalorder %s21, 0
      %p105 = por %p103, %p104
      %p106 = scmp.ne.s32.totalorder %s94, %s95
      %p107 = scmp.eq.s32.totalorder %s22, 1
      %p108 = por %p106, %p107
      %p110 = scmp.ne.s32.totalorder %s95, %s109
      %p111 = scmp.eq.s32.totalorder %s22, 0
      %p112 = por %p110, %p111
      %s114 = sadd.s32 %s113, 1
      %p117 = scmp.eq.s32.totalorder %s16, 1
      %p118 = scmp.ne.s32.totalorder %s113, %s115
      %p119 = scmp.eq.s32.totalorder %s16, 0
      %p120 = por %p118, %p119
      %p121 = scmp.ne.s32.totalorder %s113, %s115
      %p122 = scmp.eq.s32.totalorder %s21, 1
      %p123 = por %p121, %p122
      %p124 = scmp.ne.s32.totalorder %s115, %s116
      %p125 = scmp.eq.s32.totalorder %s21, 0
      %p126 = por %p124, %p125
      %p127 = scmp.ne.s32.totalorder %s115, %s116
      %p128 = scmp.eq.s32.totalorder %s22, 1
      %p129 = por %p127, %p128
      %p131 = scmp.ne.s32.totalorder %s116, %s130
      %p132 = scmp.eq.s32.totalorder %s22, 0
      %p133 = por %p131, %p132
      %s135 = sadd.s32 %s134, 1
      %p138 = scmp.eq.s32.totalorder %s16, 1
      %p139 = scmp.ne.s32.totalorder %s134, %s136
      %p140 = scmp.eq.s32.totalorder %s16, 0
      %p141 = por %p139, %p140
      %p142 = scmp.ne.s32.totalorder %s134, %s136
      %p143 = scmp.eq.s32.totalorder %s21, 1
      %p144 = por %p142, %p143
      %p145 = scmp.ne.s32.totalorder %s136, %s137
      %p146 = scmp.eq.s32.totalorder %s21, 0
      %p147 = por %p145, %p146
      %p148 = scmp.ne.s32.totalorder %s136, %s137
      %p149 = scmp.eq.s32.totalorder %s22, 1
      %p150 = por %p148, %p149
      %p152 = scmp.ne.s32.totalorder %s137, %s151
      %p153 = scmp.eq.s32.totalorder %s22, 0
      %p154 = por %p152, %p153
      %s156 = sadd.s32 %s155, 1
      %p159 = scmp.eq.s32.totalorder %s16, 1
      %p160 = scmp.ne.s32.totalorder %s155, %s157
      %p161 = scmp.eq.s32.totalorder %s16, 0
      %p162 = por %p160, %p161
      %p163 = scmp.ne.s32.totalorder %s155, %s157
      %p164 = scmp.eq.s32.totalorder %s21, 1
      %p165 = por %p163, %p164
      %p166 = scmp.ne.s32.totalorder %s157, %s158
      %p167 = scmp.eq.s32.totalorder %s21, 0
      %p168 = por %p166, %p167
      %p169 = scmp.ne.s32.totalorder %s157, %s158
      %p170 = scmp.eq.s32.totalorder %s22, 1
      %p171 = por %p169, %p170
      %p173 = scmp.ne.s32.totalorder %s158, %s172
      %p174 = scmp.eq.s32.totalorder %s22, 0
      %p175 = por %p173, %p174
      %s176 = ssub.s32 %s16, %s23
      %p177 = scmp.eq.s32.totalorder %s176, 0
      %s179 = sadd.s32 %s178, 1
      %s180 = scalar_select %p177, %s178, %s179
      %p183 = pneg %p177
      %p184 = scmp.eq.s32.totalorder %s16, 1
      %p185 = por %p183, %p184
      %p186 = scmp.ne.s32.totalorder %s178, %s181
      %p187 = scmp.eq.s32.totalorder %s16, 0
      %p188 = por %p186, %p187
      %p189 = scmp.ne.s32.totalorder %s178, %s181
      %p190 = scmp.eq.s32.totalorder %s21, 1
      %p191 = por %p189, %p190
      %p192 = scmp.ne.s32.totalorder %s181, %s182
      %p193 = scmp.eq.s32.totalorder %s21, 0
      %p194 = por %p192, %p193
      %p195 = scmp.ne.s32.totalorder %s181, %s182
      %p196 = scmp.eq.s32.totalorder %s22, 1
      %p197 = por %p195, %p196
      %p199 = scmp.ne.s32.totalorder %s182, %s198
      %p200 = scmp.eq.s32.totalorder %s22, 0
      %p201 = por %p199, %p200
      %p202 = scmp.le.s32.totalorder 1, %s16
      %p203 = scmp.lt.s32.totalorder %s16, 3
      %p204 = pnand %p202, %p203
      %p205 = pneg %p204
      // Predicated region
      $region9: #{net_qc_w_forward.1} parent=5 // pred_check
        _
      $region10: #{net_qc_w_forward.1} parent=5 // pred_check_branch
        %207 = sbr.rel (%p204) target = $region12
      $region11: #{net_qc_w_forward.1} parent=5 // pred_region
        %s208 = ssub.s32 %s16, 1
        // Predicated region
        $region13: #{net_qc_w_forward.1} parent=11 // pred_check
          %p209 = pneg %p63
        $region14: #{net_qc_w_forward.1} parent=11 // pred_check_branch
          %211 = sbr.rel (%p209) target = $region16
        $region15: #{net_qc_w_forward.1} parent=11 // pred_region
          _
        $region16: #{net_qc_w_forward.1} parent=11 // pred_fallthru
          _
        // Predicated region
        $region17: #{net_qc_w_forward.1} parent=11 // pred_check
          %p212 = pneg %p84
        $region18: #{net_qc_w_forward.1} parent=11 // pred_check_branch
          %214 = sbr.rel (%p212) target = $region20
        $region19: #{net_qc_w_forward.1} parent=11 // pred_region
          _
        $region20: #{net_qc_w_forward.1} parent=11 // pred_fallthru
          _
        // Predicated region
        $region21: #{net_qc_w_forward.1} parent=11 // pred_check
          %p215 = pneg %p105
        $region22: #{net_qc_w_forward.1} parent=11 // pred_check_branch
          %217 = sbr.rel (%p215) target = $region24
        $region23: #{net_qc_w_forward.1} parent=11 // pred_region
          _
        $region24: #{net_qc_w_forward.1} parent=11 // pred_fallthru
          _
        // Predicated region
        $region25: #{net_qc_w_forward.1} parent=11 // pred_check
          %p218 = pneg %p126
        $region26: #{net_qc_w_forward.1} parent=11 // pred_check_branch
          %220 = sbr.rel (%p218) target = $region28
        $region27: #{net_qc_w_forward.1} parent=11 // pred_region
          _
        $region28: #{net_qc_w_forward.1} parent=11 // pred_fallthru
          _
        // Predicated region
        $region29: #{net_qc_w_forward.1} parent=11 // pred_check
          %p221 = pneg %p147
        $region30: #{net_qc_w_forward.1} parent=11 // pred_check_branch
          %223 = sbr.rel (%p221) target = $region32
        $region31: #{net_qc_w_forward.1} parent=11 // pred_region
          _
        $region32: #{net_qc_w_forward.1} parent=11 // pred_fallthru
          _
        // Predicated region
        $region33: #{net_qc_w_forward.1} parent=11 // pred_check
          %p224 = pneg %p168
        $region34: #{net_qc_w_forward.1} parent=11 // pred_check_branch
          %226 = sbr.rel (%p224) target = $region36
        $region35: #{net_qc_w_forward.1} parent=11 // pred_region
          _
        $region36: #{net_qc_w_forward.1} parent=11 // pred_fallthru
          _
      $region12: #{net_qc_w_forward.1} parent=5 // pred_fallthru
        _
      %p227 = scmp.lt.s32.totalorder %s16, 2
      // Predicated region
      $region37: #{net_qc_w_forward.1} parent=5 // pred_check
        %p228 = pneg %p227
      $region38: #{net_qc_w_forward.1} parent=5 // pred_check_branch
        %230 = sbr.rel (%p228) target = $region40
      $region39: #{net_qc_w_forward.1} parent=5 // pred_region
        // Predicated region
        $region41: #{net_qc_w_forward.1} parent=39 // pred_check
          %p231 = pneg %p36
        $region42: #{net_qc_w_forward.1} parent=39 // pred_check_branch
          %233 = sbr.rel (%p231) target = $region44
        $region43: #{net_qc_w_forward.1} parent=39 // pred_region
          %s234 = smul.u32 32, %s16
          %p235 = scmp.lt.s32.totalorder %s234, 63
          %s236 = scalar_select %p235, %s234, 63
          %s237 = smul.addr %s236, 8
          %s238 = scalar_lea.vmem %s0, %s237
          %s239 = smul.u32 32, %s16
        $region44: #{net_qc_w_forward.1} parent=39 // pred_fallthru
          _
      $region40: #{net_qc_w_forward.1} parent=5 // pred_fallthru
        _
      %p240 = scmp.le.s32.totalorder 1, %s16
      %p241 = scmp.lt.s32.totalorder %s16, 3
      %p242 = pnand %p240, %p241
      %p243 = pneg %p242
      // Predicated region
      $region45: #{net_qc_w_forward.1} parent=5 // pred_check
        _
      $region46: #{net_qc_w_forward.1} parent=5 // pred_check_branch
        %245 = sbr.rel (%p242) target = $region48
      $region47: #{net_qc_w_forward.1} parent=5 // pred_region
        %s246 = ssub.s32 %s16, 1
        %s247 = smul.u32 32, %s21
        %p248 = scmp.lt.s32.totalorder %s247, 63
        %s249 = scalar_select %p248, %s247, 63
        %s250 = smul.addr %s249, 8
        %s251 = scalar_lea.vmem %s0, %s250
        %p252 = pneg %p42
        %p253 = pneg %p39
        %p254 = pneg %p63
        %p255 = pneg %p60
        %p256 = pneg %p84
        %p257 = pneg %p81
        %p258 = pneg %p105
        %p259 = pneg %p102
        %p260 = pneg %p126
        %p261 = pneg %p123
        %p262 = pneg %p147
        %p263 = pneg %p144
        %p264 = pneg %p168
        %p265 = pneg %p165
        %p266 = pneg %p194
        %p267 = pneg %p191
        %s268 = sand.u32 %s181, 1
        %s269 = scalar_lea.sflag [#allocation3], %s268
        %s270 = sand.u32 %s181, 1
        %s271 = smul.addr %s270, 8
        %s272 = scalar_lea.vmem [#allocation2], %s271
        %s273 = smul.u32 32, %s21
        %p274 = scmp.lt.s32.totalorder %s273, 63
        %s275 = scalar_select %p274, %s273, 63
        %s276 = smul.addr %s275, 8
        %s277 = scalar_lea.vmem %s0, %s276
        %s278 = smul.u32 32, %s21
        %s279 = smul.u32 2, %s21
        %v280 = vld [vmem:[%s1] sm:$0xff]
        %v281 = vld [vmem:[%s1 + $0x8] sm:$0xff]
        %v282 = vld [vmem:[%s1 + $0x10] sm:$0xff]
        %v283 = vld [vmem:[%s1 + $0x18] sm:$0xff]
        %v284 = vld [vmem:[%s3] sm:$0xff]
        %v285 = vld [vmem:[%s3 + $0x8] sm:$0xff]
        %v286 = vld [vmem:[%s3 + $0x10] sm:$0xff]
        %v287 = vld [vmem:[%s3 + $0x18] sm:$0xff]
        %v288 = vld [vmem:[%s5] sm:$0xf]
        %v289 = vld [vmem:[%s2] sm:$0xff]
        %v290 = vld [vmem:[%s2 + $0x8] sm:$0xff]
        %v291 = vld [vmem:[%s2 + $0x10] sm:$0xff]
        %v292 = vld [vmem:[%s2 + $0x18] sm:$0xff]
        %v293 = vld [vmem:[%s4] sm:$0xff]
        %v294 = vld [vmem:[%s4 + $0x8] sm:$0xff]
        %v295 = vld [vmem:[%s4 + $0x10] sm:$0xff]
        %v296 = vld [vmem:[%s4 + $0x18] sm:$0xff]
        %v297 = vld [vmem:[%s6] sm:$0xf]
        %v298 = vld [vmem:[%s277] sm:$0xff]
        %v299 = vld [vmem:[%s277 + $0x8] sm:$0xff]
        %v300 = vld [vmem:[%s277 + $0x10] sm:$0xff]
        %v301 = vld [vmem:[%s277 + $0x18] sm:$0xff]
        %v302 = vld [vmem:[%s277 + $0x20] sm:$0xff]
        %v303 = vld [vmem:[%s277 + $0x28] sm:$0xff]
        %v304 = vld [vmem:[%s277 + $0x30] sm:$0xff]
        %v305 = vld [vmem:[%s277 + $0x38] sm:$0xff]
        %v306 = vld [vmem:[%s277 + $0x40] sm:$0xff]
        %v307 = vld [vmem:[%s277 + $0x48] sm:$0xff]
        %v308 = vld [vmem:[%s277 + $0x50] sm:$0xff]
        %v309 = vld [vmem:[%s277 + $0x58] sm:$0xff]
        %v310 = vld [vmem:[%s277 + $0x60] sm:$0xff]
        %v311 = vld [vmem:[%s277 + $0x68] sm:$0xff]
        %v312 = vld [vmem:[%s277 + $0x70] sm:$0xff]
        %v313 = vld [vmem:[%s277 + $0x78] sm:$0xff]
        %v314 = vld [vmem:[%s277 + $0x80] sm:$0xff]
        %v315 = vld [vmem:[%s277 + $0x88] sm:$0xff]
        %v316 = vld [vmem:[%s277 + $0x90] sm:$0xff]
        %v317 = vld [vmem:[%s277 + $0x98] sm:$0xff]
        %v318 = vld [vmem:[%s277 + $0xa0] sm:$0xff]
        %v319 = vld [vmem:[%s277 + $0xa8] sm:$0xff]
        %v320 = vld [vmem:[%s277 + $0xb0] sm:$0xff]
        %v321 = vld [vmem:[%s277 + $0xb8] sm:$0xff]
        %v322 = vld [vmem:[%s277 + $0xc0] sm:$0xff]
        %v323 = vld [vmem:[%s277 + $0xc8] sm:$0xff]
        %v324 = vld [vmem:[%s277 + $0xd0] sm:$0xff]
        %v325 = vld [vmem:[%s277 + $0xd8] sm:$0xff]
        %v326 = vld [vmem:[%s277 + $0xe0] sm:$0xff]
        %v327 = vld [vmem:[%s277 + $0xe8] sm:$0xff]
        %v328 = vld [vmem:[%s277 + $0xf0] sm:$0xff]
        %v329 = vld [vmem:[%s277 + $0xf8] sm:$0xff]
        %331 = vset.pattern.permute.xlu0 0
        %332 = vperm.xlu0 %331, %v289
        %v333 = vpop.permute.xlu0 %332
        %336 = vset.pattern.permute.xlu0 0
        %337 = vperm.xlu0 %336, %v290
        %v338 = vpop.permute.xlu0 %337
        %341 = vset.pattern.permute.xlu0 0
        %342 = vperm.xlu0 %341, %v291
        %v343 = vpop.permute.xlu0 %342
        %346 = vset.pattern.permute.xlu0 0
        %347 = vperm.xlu0 %346, %v292
        %v348 = vpop.permute.xlu0 %347
        %vm350 = vcmask 64512
        %v352 = vsel %vm350, %v280, 0
        %v355 = vsel %vm350, %v281, 0
        %v358 = vsel %vm350, %v282, 0
        %v361 = vsel %vm350, %v283, 0
        %v364 = vsel %vm350, %v298, 0
        %v367 = vsel %vm350, %v299, 0
        %v370 = vsel %vm350, %v300, 0
        %v373 = vsel %vm350, %v301, 0
        %v376 = vsel %vm350, %v302, 0
        %v379 = vsel %vm350, %v303, 0
        %v382 = vsel %vm350, %v304, 0
        %v385 = vsel %vm350, %v305, 0
        %v388 = vsel %vm350, %v306, 0
        %v391 = vsel %vm350, %v307, 0
        %v394 = vsel %vm350, %v308, 0
        %v397 = vsel %vm350, %v309, 0
        %v400 = vsel %vm350, %v310, 0
        %v403 = vsel %vm350, %v311, 0
        %v406 = vsel %vm350, %v312, 0
        %v409 = vsel %vm350, %v313, 0
        %v412 = vsel %vm350, %v314, 0
        %v415 = vsel %vm350, %v315, 0
        %v418 = vsel %vm350, %v316, 0
        %v421 = vsel %vm350, %v317, 0
        %v424 = vsel %vm350, %v318, 0
        %v427 = vsel %vm350, %v319, 0
        %v430 = vsel %vm350, %v320, 0
        %v433 = vsel %vm350, %v321, 0
        %v436 = vsel %vm350, %v322, 0
        %v439 = vsel %vm350, %v323, 0
        %v442 = vsel %vm350, %v324, 0
        %v445 = vsel %vm350, %v325, 0
        %v448 = vsel %vm350, %v326, 0
        %v451 = vsel %vm350, %v327, 0
        %v454 = vsel %vm350, %v328, 0
        %v457 = vsel %vm350, %v329, 0
        %459 = vmatpush.xpose.msra.mxu0 %v409
        %460 = vmatpush.xpose.msra.mxu0 %v406
        %461 = vmatpush.xpose.msra.mxu0 %v403
        %462 = vmatpush.xpose.msra.mxu0 %v400
        %463 = vmatpush.xpose.msra.mxu0 %v397
        %464 = vmatpush.xpose.msra.mxu0 %v394
        %465 = vmatpush.xpose.msra.mxu0 %v391
        %466 = vmatpush.xpose.msra.mxu0 %v388
        %467 = vmatpush.xpose.msra.mxu0 %v385
        %468 = vmatpush.xpose.msra.mxu0 %v382
        %469 = vmatpush.xpose.msra.mxu0 %v379
        %470 = vmatpush.xpose.msra.mxu0 %v376
        %471 = vmatpush.xpose.msra.mxu0 %v373
        %472 = vmatpush.xpose.msra.mxu0 %v370
        %473 = vmatpush.xpose.msra.mxu0 %v367
        %474 = vmatpush.xpose.msra.mxu0 %v364
        %475 = vmatmul.f32.gmra.mxu0 %v352
        %v476 = vpop.f32.mrf.mxu0
        %v477 = vadd.f32 %v333, %v476
        %478 = vmatmul.f32.gmra.mxu0 %v355
        %v479 = vpop.f32.mrf.mxu0
        %v480 = vadd.f32 %v338, %v479
        %481 = vmatmul.f32.gmra.mxu0 %v358
        %v482 = vpop.f32.mrf.mxu0
        %v483 = vadd.f32 %v343, %v482
        %484 = vmatmul.f32.gmra.mxu0 %v361
        %v485 = vpop.f32.mrf.mxu0
        %v486 = vadd.f32 %v348, %v485
        %487 = vdwg.mxu0
        %488 = vmatpush.xpose.msra.mxu0 %v457
        %489 = vmatpush.xpose.msra.mxu0 %v454
        %490 = vmatpush.xpose.msra.mxu0 %v451
        %491 = vmatpush.xpose.msra.mxu0 %v448
        %492 = vmatpush.xpose.msra.mxu0 %v445
        %493 = vmatpush.xpose.msra.mxu0 %v442
        %494 = vmatpush.xpose.msra.mxu0 %v439
        %495 = vmatpush.xpose.msra.mxu0 %v436
        %496 = vmatpush.xpose.msra.mxu0 %v433
        %497 = vmatpush.xpose.msra.mxu0 %v430
        %498 = vmatpush.xpose.msra.mxu0 %v427
        %499 = vmatpush.xpose.msra.mxu0 %v424
        %500 = vmatpush.xpose.msra.mxu0 %v421
        %501 = vmatpush.xpose.msra.mxu0 %v418
        %502 = vmatpush.xpose.msra.mxu0 %v415
        %503 = vmatpush.xpose.msra.mxu0 %v412
        %504 = vmatmul.f32.gmra.mxu0 %v352
        %v505 = vpop.f32.mrf.mxu0
        %v506 = vadd.f32 %v333, %v505
        %507 = vmatmul.f32.gmra.mxu0 %v355
        %v508 = vpop.f32.mrf.mxu0
        %v509 = vadd.f32 %v338, %v508
        %510 = vmatmul.f32.gmra.mxu0 %v358
        %v511 = vpop.f32.mrf.mxu0
        %v512 = vadd.f32 %v343, %v511
        %513 = vmatmul.f32.gmra.mxu0 %v361
        %v514 = vpop.f32.mrf.mxu0
        %v515 = vadd.f32 %v348, %v514
        %516 = vdwg.mxu0
        %v517 = vtanh.pop %v477
        %v518 = vtanh.pop %v506
        %v519 = vtanh.pop %v480
        %v520 = vtanh.pop %v509
        %v521 = vtanh.pop %v483
        %v522 = vtanh.pop %v512
        %v523 = vtanh.pop %v486
        %v524 = vtanh.pop %v515
        %526 = vset.pattern.permute.xlu0 0
        %527 = vperm.xlu0 %526, %v293
        %v528 = vpop.permute.xlu0 %527
        %531 = vset.pattern.permute.xlu0 0
        %532 = vperm.xlu0 %531, %v294
        %v533 = vpop.permute.xlu0 %532
        %536 = vset.pattern.permute.xlu0 0
        %537 = vperm.xlu0 %536, %v295
        %v538 = vpop.permute.xlu0 %537
        %541 = vset.pattern.permute.xlu0 0
        %542 = vperm.xlu0 %541, %v296
        %v543 = vpop.permute.xlu0 %542
        %vm545 = vcmask 261120
        %v547 = vsel %vm545, %v284, 0
        %v550 = vsel %vm545, %v285, 0
        %v553 = vsel %vm545, %v286, 0
        %v556 = vsel %vm545, %v287, 0
        %558 = vmatpush.msra.mxu0 0.0
        %559 = vmatpush.msra.mxu0 0.0
        %560 = vmatpush.msra.mxu0 0.0
        %561 = vmatpush.msra.mxu0 0.0
        %562 = vmatpush.msra.mxu0 0.0
        %563 = vmatpush.msra.mxu0 0.0
        %564 = vmatpush.msra.mxu0 0.0
        %565 = vmatpush.msra.mxu0 0.0
        %566 = vmatpush.msra.mxu0 0.0
        %567 = vmatpush.msra.mxu0 0.0
        %568 = vmatpush.msra.mxu0 0.0
        %569 = vmatpush.msra.mxu0 0.0
        %570 = vmatpush.msra.mxu0 %v523
        %571 = vmatpush.msra.mxu0 %v521
        %572 = vmatpush.msra.mxu0 %v519
        %573 = vmatpush.msra.mxu0 %v517
        %574 = vmatmul.f32.gmra.mxu0 %v547
        %v575 = vpop.f32.mrf.mxu0
        %v576 = vadd.f32 %v528, %v575
        %577 = vmatmul.f32.gmra.mxu0 %v550
        %v578 = vpop.f32.mrf.mxu0
        %v579 = vadd.f32 %v533, %v578
        %580 = vmatmul.f32.gmra.mxu0 %v553
        %v581 = vpop.f32.mrf.mxu0
        %v582 = vadd.f32 %v538, %v581
        %583 = vmatmul.f32.gmra.mxu0 %v556
        %v584 = vpop.f32.mrf.mxu0
        %v585 = vadd.f32 %v543, %v584
        %586 = vdwg.mxu0
        %587 = vmatpush.msra.mxu0 0.0
        %588 = vmatpush.msra.mxu0 0.0
        %589 = vmatpush.msra.mxu0 0.0
        %590 = vmatpush.msra.mxu0 0.0
        %591 = vmatpush.msra.mxu0 0.0
        %592 = vmatpush.msra.mxu0 0.0
        %593 = vmatpush.msra.mxu0 0.0
        %594 = vmatpush.msra.mxu0 0.0
        %595 = vmatpush.msra.mxu0 0.0
        %596 = vmatpush.msra.mxu0 0.0
        %597 = vmatpush.msra.mxu0 0.0
        %598 = vmatpush.msra.mxu0 0.0
        %599 = vmatpush.msra.mxu0 %v524
        %600 = vmatpush.msra.mxu0 %v522
        %601 = vmatpush.msra.mxu0 %v520
        %602 = vmatpush.msra.mxu0 %v518
        %603 = vmatmul.f32.gmra.mxu0 %v547
        %v604 = vpop.f32.mrf.mxu0
        %v605 = vadd.f32 %v528, %v604
        %606 = vmatmul.f32.gmra.mxu0 %v550
        %v607 = vpop.f32.mrf.mxu0
        %v608 = vadd.f32 %v533, %v607
        %609 = vmatmul.f32.gmra.mxu0 %v553
        %v610 = vpop.f32.mrf.mxu0
        %v611 = vadd.f32 %v538, %v610
        %612 = vmatmul.f32.gmra.mxu0 %v556
        %v613 = vpop.f32.mrf.mxu0
        %v614 = vadd.f32 %v543, %v613
        %615 = vdwg.mxu0
        %v616 = vtanh.pop %v576
        %v617 = vtanh.pop %v605
        %v618 = vtanh.pop %v579
        %v619 = vtanh.pop %v608
        %v620 = vtanh.pop %v582
        %v621 = vtanh.pop %v611
        %v622 = vtanh.pop %v585
        %v623 = vtanh.pop %v614
        %625 = vset.pattern.permute.xlu0 0
        %626 = vperm.xlu0 %625, %v297
        %v627 = vpop.permute.xlu0 %626
        %v630 = vsel %vm545, %v288, 0
        %632 = vmatpush.msra.mxu0 0.0
        %633 = vmatpush.msra.mxu0 0.0
        %634 = vmatpush.msra.mxu0 0.0
        %635 = vmatpush.msra.mxu0 0.0
        %636 = vmatpush.msra.mxu0 0.0
        %637 = vmatpush.msra.mxu0 0.0
        %638 = vmatpush.msra.mxu0 0.0
        %639 = vmatpush.msra.mxu0 0.0
        %640 = vmatpush.msra.mxu0 0.0
        %641 = vmatpush.msra.mxu0 0.0
        %642 = vmatpush.msra.mxu0 0.0
        %643 = vmatpush.msra.mxu0 0.0
        %644 = vmatpush.msra.mxu0 %v622
        %645 = vmatpush.msra.mxu0 %v620
        %646 = vmatpush.msra.mxu0 %v618
        %647 = vmatpush.msra.mxu0 %v616
        %648 = vmatmul.f32.gmra.mxu0 %v630
        %v649 = vpop.f32.mrf.mxu0
        %v650 = vadd.f32 %v627, %v649
        %651 = vdwg.mxu0
        %652 = vmatpush.msra.mxu0 0.0
        %653 = vmatpush.msra.mxu0 0.0
        %654 = vmatpush.msra.mxu0 0.0
        %655 = vmatpush.msra.mxu0 0.0
        %656 = vmatpush.msra.mxu0 0.0
        %657 = vmatpush.msra.mxu0 0.0
        %658 = vmatpush.msra.mxu0 0.0
        %659 = vmatpush.msra.mxu0 0.0
        %660 = vmatpush.msra.mxu0 0.0
        %661 = vmatpush.msra.mxu0 0.0
        %662 = vmatpush.msra.mxu0 0.0
        %663 = vmatpush.msra.mxu0 0.0
        %664 = vmatpush.msra.mxu0 %v623
        %665 = vmatpush.msra.mxu0 %v621
        %666 = vmatpush.msra.mxu0 %v619
        %667 = vmatpush.msra.mxu0 %v617
        %668 = vmatmul.f32.gmra.mxu0 %v630
        %v669 = vpop.f32.mrf.mxu0
        %v670 = vadd.f32 %v627, %v669
        %671 = vdwg.mxu0
        %v674 = vrot.slane %v670, 4
        %vm675 = vcmask 1043456
        %v676 = vsel %vm675, %v650, %v674
        %678 = vst [vmem:[%s272] sm:$0xff] %v676
        %s679 = sand.u32 %s181, 1
        %s680 = scalar_lea.sflag [#allocation3], %s679
        %s681 = sand.u32 %s181, 1
        %s682 = smul.addr %s681, 8
        %s683 = scalar_lea.vmem [#allocation2], %s682
        // Predicated region
        $region49: #{net_qc_w_forward.1} parent=47 // pred_check
          %p684 = pneg %p191
        $region50: #{net_qc_w_forward.1} parent=47 // pred_check_branch
          %686 = sbr.rel (%p684) target = $region52
        $region51: #{net_qc_w_forward.1} parent=47 // pred_region
          %s687 = smul.u32 2, %s21
          %689 = vsyncadd %s680, 0
          %s690 = smul.addr %s687, 4
          %s691 = scalar_lea.hbm %s7, %s690
          %s693 = sshll.u32 %s683, 4
          %s694 = int_to_ptr.vmem [resolvable:$true] %s693
          %s695 = sshll.u32 %s691, 4
          %s696 = int_to_ptr.hbm [resolvable:$true] %s695
          %698 = dma.vmem_to_hbm [thread:$0]  %s694, 128, %s696, %s680
        $region52: #{net_qc_w_forward.1} parent=47 // pred_fallthru
          _
      $region48: #{net_qc_w_forward.1} parent=5 // pred_fallthru
        _
      %p699 = scmp.le.s32.totalorder 2, %s16
      // Predicated region
      $region53: #{net_qc_w_forward.1} parent=5 // pred_check
        %p700 = pneg %p699
      $region54: #{net_qc_w_forward.1} parent=5 // pred_check_branch
        %702 = sbr.rel (%p700) target = $region56
      $region55: #{net_qc_w_forward.1} parent=5 // pred_region
        %s703 = ssub.s32 %s16, 2
        // Predicated region
        $region57: #{net_qc_w_forward.1} parent=55 // pred_check
          %p704 = pneg %p197
        $region58: #{net_qc_w_forward.1} parent=55 // pred_check_branch
          %706 = sbr.rel (%p704) target = $region60
        $region59: #{net_qc_w_forward.1} parent=55 // pred_region
          %s707 = sand.u32 %s182, 1
          %s708 = scalar_lea.sflag [#allocation3], %s707
          %s709 = sand.u32 %s182, 1
          %s710 = smul.addr %s709, 8
          %s711 = scalar_lea.vmem [#allocation2], %s710
          %713 = dma.done %s708, 128
        $region60: #{net_qc_w_forward.1} parent=55 // pred_fallthru
          _
      $region56: #{net_qc_w_forward.1} parent=5 // pred_fallthru
        _
    $region6: #{net_qc_w_forward.1} parent=1 // loop_footer
      %s20 = sadd.s32 1, %s16
    $region7: #{net_qc_w_forward.1} parent=1 // loop_footer_branch
      %15 = sbr.rel target = $region3
    $region8: #{net_qc_w_forward.1} parent=1 // loop_exit
      _
    %714 = vsyncpa [#allocation3], 1
    %s715 = scalar_lea.sflag [#allocation3], 1
    %716 = vsyncpa %s715, 1

</llo_original>
